<compile_context>
chip_gen: v6e
topology: v6e:2x2x1
jax: 0.10.0
libtpu: 0.0.40
codegen_flags: <defaults>
</compile_context>

<pallas_src>
from typing import NamedTuple

import jax
import jax.numpy as jnp
from jax.experimental import pallas as pl
from jax.experimental.pallas import tpu as pltpu

_LANE = 128
_SUBLANE = 8
_MXU_M = 256        # MXU M tile on v6e/v7x (and a multiple of v5e's 128)


def _round_up(n, m):
    return ((n + m - 1) // m) * m


def _pad2(a, rows, cols):
    r, c = a.shape
    return jnp.pad(a, ((0, rows - r), (0, cols - c)))


def _vmem_capacity_bytes():
    """Per-core VMEM capacity; conservative (v7x-sized) fallback if the query fails."""
    try:
        cap = getattr(pltpu.get_tpu_info(), "vmem_capacity_bytes", None)
        if cap:
            return int(cap)
    except Exception:
        pass
    return 64 << 20


# ----------------------------------------------------------------------------
# Prepared (lane-padded, compute-dtype) parameters for one 3-layer MLP block.
# ----------------------------------------------------------------------------
class PreparedBlock(NamedTuple):
    w1: jax.Array
    b1: jax.Array
    w2: jax.Array
    b2: jax.Array
    w3: jax.Array
    b3: jax.Array
    in_dim: int
    out_dim: int
    lat_p: int
    out_p: int
    compute_dtype: object


def prepare_block_params(params, compute_dtype=jnp.bfloat16):
    """Pad feature dims to lane width and cast to the matmul dtype ONCE (not per forward).

    params = (w1, b1, w2, b2, w3, b3) with weights stored as [in, out], biases as [1, out].
    Zero-padded weight/bias columns stay exactly zero through bias-add and ReLU, so padding
    the latent dim to 128 is numerically exact.
    """
    w1, b1, w2, b2, w3, b3 = params
    in_dim, latent = w1.shape
    out_dim = w3.shape[1]
    lat_p = _round_up(max(latent, _LANE), _LANE)
    out_p = _round_up(max(out_dim, _LANE), _LANE)
    return PreparedBlock(
        w1=_pad2(w1, in_dim, lat_p).astype(compute_dtype),
        b1=_pad2(b1, 1, lat_p).astype(jnp.float32),
        w2=_pad2(w2, lat_p, lat_p).astype(compute_dtype),
        b2=_pad2(b2, 1, lat_p).astype(jnp.float32),
        w3=_pad2(w3, lat_p, out_p).astype(compute_dtype),
        b3=_pad2(b3, 1, out_p).astype(jnp.float32),
        in_dim=in_dim, out_dim=out_dim, lat_p=lat_p, out_p=out_p,
        compute_dtype=compute_dtype,
    )


# ----------------------------------------------------------------------------
# Pallas kernel: fused 3-layer MLP block (Linear -> ReLU -> Linear -> ReLU -> Linear).
# One grid step processes one batch tile; weights/biases are whole-array resident blocks.
# ----------------------------------------------------------------------------
def _mlp_block_kernel(x_ref, w1_ref, b1_ref, w2_ref, b2_ref, w3_ref, b3_ref, o_ref):
    # x arrives in its HBM dtype (no wrapper-side cast pass); the cast is a free VPU op.
    x = x_ref[...].astype(w1_ref.dtype)

    # Layer 1: MXU matmul with f32 accumulation, bias+ReLU in f32.
    h1 = jnp.dot(x, w1_ref[...], preferred_element_type=jnp.float32) + b1_ref[...]
    h1 = jnp.maximum(h1, 0.0).astype(w2_ref.dtype)          # Dropout = identity (eval)

    # Layer 2.
    h2 = jnp.dot(h1, w2_ref[...], preferred_element_type=jnp.float32) + b2_ref[...]
    h2 = jnp.maximum(h2, 0.0).astype(w3_ref.dtype)          # Dropout = identity (eval)

    # Layer 3: lane-dense matmul; store only the real output columns.  For the out_dim=1
    # prior/value heads this cuts HBM writeback from 512 B/row (padded f32 x128) to 4 B/row.
    out = jnp.dot(h2, w3_ref[...], preferred_element_type=jnp.float32) + b3_ref[...]
    o_ref[...] = out[:, : o_ref.shape[1]].astype(o_ref.dtype)


# ----------------------------------------------------------------------------
# Tiling / VMEM heuristics and the pallas_call wrapper.
# ----------------------------------------------------------------------------
def _pick_batch_tile(B, batch_tile):
    batch_tile = max(_SUBLANE, _round_up(batch_tile, _SUBLANE))
    if B > batch_tile:
        return batch_tile
    if B > 2 * _MXU_M:
        # Split into >=2 tiles so both TensorCores get work on v7x megacore.
        return min(batch_tile, _round_up((B + 1) // 2, _MXU_M))
    return _round_up(B, _SUBLANE)


def _vmem_need_bytes(tb, prep, x_bytes, o_bytes, nbuf_w):
    """Per-step VMEM footprint (no double counting: the 2x buffers are explicit)."""
    w_bytes = jnp.dtype(prep.compute_dtype).itemsize
    act = 2 * tb * prep.in_dim * x_bytes                      # double-buffered x tiles
    out = 2 * tb * prep.out_dim * o_bytes                     # double-buffered out tiles
    wts = (prep.in_dim * prep.lat_p + prep.lat_p * prep.lat_p
           + prep.lat_p * prep.out_p) * w_bytes * nbuf_w
    bia = (2 * prep.lat_p + prep.out_p) * 4 * nbuf_w
    tmp = (tb * prep.in_dim + 2 * tb * prep.lat_p + tb * prep.out_p) * 4  # cast + h1/h2/out f32
    return act + out + wts + bia + tmp


_SINGLE_BUFFER_WEIGHTS = None   # None = unknown; probed once, then cached.


def _call_pallas(xp, prep, tb, out_dtype, vmem_limit, single_buffer_weights):
    Bp = xp.shape[0]
    grid = (Bp // tb,)

    if single_buffer_weights:
        # Constant-index operands never change block: single-buffer them so the default
        # double-buffering does not waste VMEM (frees room for larger batch tiles).
        def wspec(shape):
            return pl.BlockSpec(shape, lambda i: (0, 0), pipeline_mode=pl.Buffered(1))
    else:
        def wspec(shape):
            return pl.BlockSpec(shape, lambda i: (0, 0))

    in_specs = [
        pl.BlockSpec((tb, prep.in_dim), lambda i: (i, 0)),    # x: tiled over batch
        wspec(prep.w1.shape), wspec(prep.b1.shape),
        wspec(prep.w2.shape), wspec(prep.b2.shape),
        wspec(prep.w3.shape), wspec(prep.b3.shape),
    ]
    return pl.pallas_call(
        _mlp_block_kernel,
        out_shape=jax.ShapeDtypeStruct((Bp, prep.out_dim), out_dtype),
        grid=grid,
        in_specs=in_specs,
        out_specs=pl.BlockSpec((tb, prep.out_dim), lambda i: (i, 0)),
        compiler_params=pltpu.CompilerParams(
            dimension_semantics=("parallel",),    # batch tiles shard across TCs on v7x
            vmem_limit_bytes=vmem_limit,
        ),
    )(xp, prep.w1, prep.b1, prep.w2, prep.b2, prep.w3, prep.b3)


def mlp_block_prepared(x, prep, *, batch_tile=2048):
    """Apply one SharedMLP block (3 linears, 2 ReLUs) with a single Pallas kernel call."""
    global _SINGLE_BUFFER_WEIGHTS
    B, in_dim = x.shape
    assert in_dim == prep.in_dim, (in_dim, prep.in_dim)
    out_dtype = x.dtype

    x_bytes = jnp.dtype(x.dtype).itemsize
    o_bytes = jnp.dtype(out_dtype).itemsize

    cap = _vmem_capacity_bytes()
    budget = (cap * 7) // 10
    tb = _pick_batch_tile(B, batch_tile)
    # Shrink the batch tile if the per-step footprint would not fit (v7x has only 64 MiB).
    while _vmem_need_bytes(tb, prep, x_bytes, o_bytes, nbuf_w=2) > budget and tb > _MXU_M:
        tb = max(_MXU_M, _round_up(tb // 2, _SUBLANE))

    # Pad only the ragged remainder rows; no dtype cast pass over x (cast happens in-kernel).
    Bp = _round_up(B, tb)
    xp = x if Bp == B else jnp.pad(x, ((0, Bp - B), (0, 0)))

    need = _vmem_need_bytes(tb, prep, x_bytes, o_bytes, nbuf_w=2)
    vmem_limit = int(min(max(cap - (4 << 20), 32 << 20), max((need * 5) // 4, 32 << 20)))

    args = (xp, prep, tb, out_dtype, vmem_limit)
    if _SINGLE_BUFFER_WEIGHTS is not False:
        try:
            out = _call_pallas(*args, single_buffer_weights=True)
            _SINGLE_BUFFER_WEIGHTS = True
        except Exception:
            # pipeline_mode / Buffered(1) unsupported on this JAX version: fall back.
            _SINGLE_BUFFER_WEIGHTS = False
            out = _call_pallas(*args, single_buffer_weights=False)
    else:
        out = _call_pallas(*args, single_buffer_weights=False)

    return out if Bp == B else out[:B]


def mlp_block(x, params, *, batch_tile=2048, compute_dtype=jnp.bfloat16):
    """One-shot convenience: prepares (pads+casts) params then runs.  For repeated forwards
    prepare once with prepare_block_params and call mlp_block_prepared."""
    return mlp_block_prepared(x, prepare_block_params(params, compute_dtype),
                              batch_tile=batch_tile)


# ----------------------------------------------------------------------------
# Parameter construction (PyTorch nn.Linear default init, deterministic).
# ----------------------------------------------------------------------------
def _init_linear(key, in_dim, out_dim, dtype=jnp.float32):
    # PyTorch Linear: weight, bias ~ U(-1/sqrt(fan_in), 1/sqrt(fan_in)); weight is (out, in).
    kw, kb = jax.random.split(key)
    bound = 1.0 / jnp.sqrt(jnp.asarray(in_dim, dtype=jnp.float32))
    w = jax.random.uniform(kw, (out_dim, in_dim), dtype, -bound, bound)
    b = jax.random.uniform(kb, (out_dim,), dtype, -bound, bound)
    # Store transposed weight [in, out] and 2-D bias [1, out] for the kernel layout.
    return w.T, b.reshape(1, out_dim)


def _init_block(key, in_dim, out_dim, latent_dim):
    k1, k2, k3 = jax.random.split(key, 3)
    w1, b1 = _init_linear(k1, in_dim, latent_dim)
    w2, b2 = _init_linear(k2, latent_dim, latent_dim)
    w3, b3 = _init_linear(k3, latent_dim, out_dim)
    return (w1, b1, w2, b2, w3, b3)


class SharedMLP:
    """JAX/Pallas port of retro_star SharedMLP (forward pass, eval mode)."""

    def __init__(self, fp_dim, latent_dim, dropout_rate, key, compute_dtype=jnp.bfloat16):
        self.fp_dim = fp_dim
        self.latent_dim = latent_dim
        self.dropout_rate = dropout_rate      # unused in eval-mode forward
        self.compute_dtype = compute_dtype
        kr, kv, kp = jax.random.split(key, 3)
        self.representation_layers = _init_block(kr, fp_dim, latent_dim, latent_dim)
        self.value_layers = _init_block(kv, latent_dim, 1, latent_dim)
        self.prior_layers = _init_block(kp, latent_dim, 1, latent_dim)
        # In the reference code _generate_blk overwrites self.layers; the last call wins.
        self.layers = self.prior_layers
        # Pre-pad / pre-cast weights ONCE (not on every forward call).
        self._rep_prepared = prepare_block_params(self.representation_layers, compute_dtype)
        self._value_prepared = prepare_block_params(self.value_layers, compute_dtype)
        self._prior_prepared = prepare_block_params(self.prior_layers, compute_dtype)
        self._layers_prepared = self._prior_prepared

    def forward(self, fps, batch_tile=2048):
        # x = self.layers(x): prior block, latent_dim -> 1 (eval mode: dropout = identity).
        return mlp_block_prepared(fps, self._layers_prepared, batch_tile=batch_tile)


# ----------------------------------------------------------------------------
# Pure-JAX reference for correctness checks.
# ----------------------------------------------------------------------------
def _ref_block(x, params):
    w1, b1, w2, b2, w3, b3 = params
    h = jnp.maximum(x @ w1 + b1, 0.0)
    h = jnp.maximum(h @ w2 + b2, 0.0)
    return h @ w3 + b3


if __name__ == "__main__":
    key = jax.random.PRNGKey(0)
    k_param, k_fps, k_big = jax.random.split(key, 3)

    FP_DIM, LATENT_DIM, BATCH = 64, 32, 2
    model = SharedMLP(fp_dim=FP_DIM, latent_dim=LATENT_DIM, dropout_rate=0.1, key=k_param)

    # forward() consumes features of width latent_dim (self.layers == prior block).
    fps = jax.random.normal(k_fps, (BATCH, LATENT_DIM), dtype=jnp.float32)
    ref = _ref_block(fps, model.layers)

    # Exact check: f32 compute path must match the JAX reference tightly.
    out_f32 = jax.block_until_ready(
        mlp_block(fps, model.layers, compute_dtype=jnp.float32))
    assert out_f32.shape == (BATCH, 1), out_f32.shape
    assert out_f32.dtype == fps.dtype
    assert jnp.allclose(out_f32, ref, atol=1e-5, rtol=1e-5), (out_f32, ref)

    # Default (bf16 MXU operands, f32 accumulation) path via prepared params.
    out_bf16 = jax.block_until_ready(model.forward(fps))
    assert out_bf16.shape == (BATCH, 1), out_bf16.shape
    assert jnp.allclose(out_bf16, ref, atol=5e-2, rtol=5e-2), (out_bf16, ref)

    # Representation block (fp_dim -> latent_dim), batch not a multiple of 8:
    # exercises remainder-row padding and the narrow (out_dim-wide) output store.
    x_rep = jax.random.normal(k_big, (300, FP_DIM), dtype=jnp.float32)
    rep = jax.block_until_ready(
        mlp_block(x_rep, model.representation_layers, compute_dtype=jnp.float32))
    assert rep.shape == (300, LATENT_DIM), rep.shape
    assert jnp.allclose(rep, _ref_block(x_rep, model.representation_layers),
                        atol=1e-5, rtol=1e-5)

    # Larger batch: adaptive tile splits into 2 grid steps (megacore path on v7x).
    x_big = jax.random.normal(k_big, (1024, FP_DIM), dtype=jnp.float32)
    prep_rep = prepare_block_params(model.representation_layers, jnp.float32)
    big = jax.block_until_ready(mlp_block_prepared(x_big, prep_rep))
    assert big.shape == (1024, LATENT_DIM), big.shape
    assert jnp.allclose(big, _ref_block(x_big, model.representation_layers),
                        atol=1e-5, rtol=1e-5)

    print("KERNEL_OK")
</pallas_src>

<mosaic_0001>
module attributes {stable_mosaic.version = 11 : i64} {
  func.func @_mlp_block_kernel(%arg0: i32, %arg1: memref<8x32xf32, #tpu.memory_space<vmem>>, %arg2: memref<32x128xf32, #tpu.memory_space<vmem>>, %arg3: memref<1x128xf32, #tpu.memory_space<vmem>>, %arg4: memref<128x128xf32, #tpu.memory_space<vmem>>, %arg5: memref<1x128xf32, #tpu.memory_space<vmem>>, %arg6: memref<128x128xf32, #tpu.memory_space<vmem>>, %arg7: memref<1x128xf32, #tpu.memory_space<vmem>>, %arg8: memref<8x1xf32, #tpu.memory_space<vmem>>) attributes {dimension_semantics = [#tpu.dimension_semantics<parallel>], iteration_bounds = array<i64: 1>, scalar_prefetch = 0 : i64, scratch_operands = 0 : i64, tpu.core_type = #tpu.core_type<tc>, window_params = [{transform_indices = @transform_0, window_bounds = array<i64: 8, 32>}, {pipeline_mode = #tpu.pipeline_mode<synchronous>, transform_indices = @transform_1, window_bounds = array<i64: 32, 128>}, {pipeline_mode = #tpu.pipeline_mode<synchronous>, transform_indices = @transform_2, window_bounds = array<i64: 1, 128>}, {pipeline_mode = #tpu.pipeline_mode<synchronous>, transform_indices = @transform_3, window_bounds = array<i64: 128, 128>}, {pipeline_mode = #tpu.pipeline_mode<synchronous>, transform_indices = @transform_4, window_bounds = array<i64: 1, 128>}, {pipeline_mode = #tpu.pipeline_mode<synchronous>, transform_indices = @transform_5, window_bounds = array<i64: 128, 128>}, {pipeline_mode = #tpu.pipeline_mode<synchronous>, transform_indices = @transform_6, window_bounds = array<i64: 1, 128>}, {transform_indices = @transform_7, window_bounds = array<i64: 8, 1>}]} {
    %c0 = arith.constant 0 : index
    %c0_0 = arith.constant 0 : index
    %0 = vector.load %arg1[%c0, %c0_0] : memref<8x32xf32, #tpu.memory_space<vmem>>, vector<8x32xf32>
    %c0_1 = arith.constant 0 : index
    %c0_2 = arith.constant 0 : index
    %1 = vector.load %arg2[%c0_1, %c0_2] : memref<32x128xf32, #tpu.memory_space<vmem>>, vector<32x128xf32>
    %cst = arith.constant dense<0.000000e+00> : vector<8x128xf32>
    %2 = tpu.matmul %0, %1, %cst {dimension_numbers = #tpu.dot_dimension_numbers<[1], [0], [0], [1], [0, 0, 1, 1], [], []>} : vector<8x32xf32>, vector<32x128xf32>, vector<8x128xf32> -> vector<8x128xf32>
    %c0_3 = arith.constant 0 : index
    %c0_4 = arith.constant 0 : index
    %3 = vector.load %arg3[%c0_3, %c0_4] : memref<1x128xf32, #tpu.memory_space<vmem>>, vector<1x128xf32>
    %4 = vector.broadcast %3 : vector<1x128xf32> to vector<8x128xf32>
    %5 = arith.addf %2, %4 : vector<8x128xf32>
    %cst_5 = arith.constant 0.000000e+00 : f32
    %6 = vector.broadcast %cst_5 : f32 to vector<8x128xf32>
    %7 = arith.maximumf %5, %6 : vector<8x128xf32>
    %c0_6 = arith.constant 0 : index
    %c0_7 = arith.constant 0 : index
    %8 = vector.load %arg4[%c0_6, %c0_7] : memref<128x128xf32, #tpu.memory_space<vmem>>, vector<128x128xf32>
    %cst_8 = arith.constant dense<0.000000e+00> : vector<8x128xf32>
    %9 = tpu.matmul %7, %8, %cst_8 {dimension_numbers = #tpu.dot_dimension_numbers<[1], [0], [0], [1], [0, 0, 1, 1], [], []>} : vector<8x128xf32>, vector<128x128xf32>, vector<8x128xf32> -> vector<8x128xf32>
    %c0_9 = arith.constant 0 : index
    %c0_10 = arith.constant 0 : index
    %10 = vector.load %arg5[%c0_9, %c0_10] : memref<1x128xf32, #tpu.memory_space<vmem>>, vector<1x128xf32>
    %11 = vector.broadcast %10 : vector<1x128xf32> to vector<8x128xf32>
    %12 = arith.addf %9, %11 : vector<8x128xf32>
    %cst_11 = arith.constant 0.000000e+00 : f32
    %13 = vector.broadcast %cst_11 : f32 to vector<8x128xf32>
    %14 = arith.maximumf %12, %13 : vector<8x128xf32>
    %c0_12 = arith.constant 0 : index
    %c0_13 = arith.constant 0 : index
    %15 = vector.load %arg6[%c0_12, %c0_13] : memref<128x128xf32, #tpu.memory_space<vmem>>, vector<128x128xf32>
    %cst_14 = arith.constant dense<0.000000e+00> : vector<8x128xf32>
    %16 = tpu.matmul %14, %15, %cst_14 {dimension_numbers = #tpu.dot_dimension_numbers<[1], [0], [0], [1], [0, 0, 1, 1], [], []>} : vector<8x128xf32>, vector<128x128xf32>, vector<8x128xf32> -> vector<8x128xf32>
    %c0_15 = arith.constant 0 : index
    %c0_16 = arith.constant 0 : index
    %17 = vector.load %arg7[%c0_15, %c0_16] : memref<1x128xf32, #tpu.memory_space<vmem>>, vector<1x128xf32>
    %18 = vector.broadcast %17 : vector<1x128xf32> to vector<8x128xf32>
    %19 = arith.addf %16, %18 : vector<8x128xf32>
    %20 = vector.extract_strided_slice %19 {offsets = [0, 0], sizes = [8, 1], strides = [1, 1]} : vector<8x128xf32> to vector<8x1xf32>
    %c0_17 = arith.constant 0 : index
    %c0_18 = arith.constant 0 : index
    %21 = vector.load %arg8[%c0_17, %c0_18] : memref<8x1xf32, #tpu.memory_space<vmem>>, vector<8x1xf32>
    tpu.vector_store %arg8[%c0_17, %c0_18], %20 {strides = array<i32>} : memref<8x1xf32, #tpu.memory_space<vmem>>, vector<8x1xf32>,
    return
  }
  func.func @transform_0(%arg0: i32) -> (i32, i32) {
    %c0_i32 = arith.constant 0 : i32
    %c0_i32_0 = arith.constant 0 : i32
    return %arg0, %c0_i32 : i32, i32
  }
  func.func @transform_1(%arg0: i32) -> (i32, i32) {
    %c0_i32 = arith.constant 0 : i32
    %c0_i32_0 = arith.constant 0 : i32
    %c0_i32_1 = arith.constant 0 : i32
    return %c0_i32, %c0_i32_0 : i32, i32
  }
  func.func @transform_2(%arg0: i32) -> (i32, i32) {
    %c0_i32 = arith.constant 0 : i32
    %c0_i32_0 = arith.constant 0 : i32
    %c0_i32_1 = arith.constant 0 : i32
    return %c0_i32, %c0_i32_0 : i32, i32
  }
  func.func @transform_3(%arg0: i32) -> (i32, i32) {
    %c0_i32 = arith.constant 0 : i32
    %c0_i32_0 = arith.constant 0 : i32
    %c0_i32_1 = arith.constant 0 : i32
    return %c0_i32, %c0_i32_0 : i32, i32
  }
  func.func @transform_4(%arg0: i32) -> (i32, i32) {
    %c0_i32 = arith.constant 0 : i32
    %c0_i32_0 = arith.constant 0 : i32
    %c0_i32_1 = arith.constant 0 : i32
    return %c0_i32, %c0_i32_0 : i32, i32
  }
  func.func @transform_5(%arg0: i32) -> (i32, i32) {
    %c0_i32 = arith.constant 0 : i32
    %c0_i32_0 = arith.constant 0 : i32
    %c0_i32_1 = arith.constant 0 : i32
    return %c0_i32, %c0_i32_0 : i32, i32
  }
  func.func @transform_6(%arg0: i32) -> (i32, i32) {
    %c0_i32 = arith.constant 0 : i32
    %c0_i32_0 = arith.constant 0 : i32
    %c0_i32_1 = arith.constant 0 : i32
    return %c0_i32, %c0_i32_0 : i32, i32
  }
  func.func @transform_7(%arg0: i32) -> (i32, i32) {
    %c0_i32 = arith.constant 0 : i32
    %c0_i32_0 = arith.constant 0 : i32
    return %arg0, %c0_i32 : i32, i32
  }
}

module attributes {stable_mosaic.version = 11 : i64} {
  func.func @_mlp_block_kernel(%arg0: i32, %arg1: memref<8x32xf32, #tpu.memory_space<vmem>>, %arg2: memref<32x128xf32, #tpu.memory_space<vmem>>, %arg3: memref<1x128xf32, #tpu.memory_space<vmem>>, %arg4: memref<128x128xf32, #tpu.memory_space<vmem>>, %arg5: memref<1x128xf32, #tpu.memory_space<vmem>>, %arg6: memref<128x128xf32, #tpu.memory_space<vmem>>, %arg7: memref<1x128xf32, #tpu.memory_space<vmem>>, %arg8: memref<8x1xf32, #tpu.memory_space<vmem>>) attributes {dimension_semantics = [#tpu.dimension_semantics<parallel>], iteration_bounds = array<i64: 1>, scalar_prefetch = 0 : i64, scratch_operands = 0 : i64, tpu.core_type = #tpu.core_type<tc>, window_params = [{transform_indices = @transform_0, window_bounds = array<i64: 8, 32>}, {pipeline_mode = #tpu.pipeline_mode<synchronous>, transform_indices = @transform_1, window_bounds = array<i64: 32, 128>}, {pipeline_mode = #tpu.pipeline_mode<synchronous>, transform_indices = @transform_2, window_bounds = array<i64: 1, 128>}, {pipeline_mode = #tpu.pipeline_mode<synchronous>, transform_indices = @transform_3, window_bounds = array<i64: 128, 128>}, {pipeline_mode = #tpu.pipeline_mode<synchronous>, transform_indices = @transform_4, window_bounds = array<i64: 1, 128>}, {pipeline_mode = #tpu.pipeline_mode<synchronous>, transform_indices = @transform_5, window_bounds = array<i64: 128, 128>}, {pipeline_mode = #tpu.pipeline_mode<synchronous>, transform_indices = @transform_6, window_bounds = array<i64: 1, 128>}, {transform_indices = @transform_7, window_bounds = array<i64: 8, 1>}]} {
    %c0 = arith.constant 0 : index
    %c0_0 = arith.constant 0 : index
    %0 = vector.load %arg1[%c0, %c0_0] : memref<8x32xf32, #tpu.memory_space<vmem>>, vector<8x32xf32>
    %c0_1 = arith.constant 0 : index
    %c0_2 = arith.constant 0 : index
    %1 = vector.load %arg2[%c0_1, %c0_2] : memref<32x128xf32, #tpu.memory_space<vmem>>, vector<32x128xf32>
    %cst = arith.constant dense<0.000000e+00> : vector<8x128xf32>
    %2 = tpu.matmul %0, %1, %cst {dimension_numbers = #tpu.dot_dimension_numbers<[1], [0], [0], [1], [0, 0, 1, 1], [], []>} : vector<8x32xf32>, vector<32x128xf32>, vector<8x128xf32> -> vector<8x128xf32>
    %c0_3 = arith.constant 0 : index
    %c0_4 = arith.constant 0 : index
    %3 = vector.load %arg3[%c0_3, %c0_4] : memref<1x128xf32, #tpu.memory_space<vmem>>, vector<1x128xf32>
    %4 = vector.broadcast %3 : vector<1x128xf32> to vector<8x128xf32>
    %5 = arith.addf %2, %4 : vector<8x128xf32>
    %cst_5 = arith.constant 0.000000e+00 : f32
    %6 = vector.broadcast %cst_5 : f32 to vector<8x128xf32>
    %7 = arith.maximumf %5, %6 : vector<8x128xf32>
    %c0_6 = arith.constant 0 : index
    %c0_7 = arith.constant 0 : index
    %8 = vector.load %arg4[%c0_6, %c0_7] : memref<128x128xf32, #tpu.memory_space<vmem>>, vector<128x128xf32>
    %cst_8 = arith.constant dense<0.000000e+00> : vector<8x128xf32>
    %9 = tpu.matmul %7, %8, %cst_8 {dimension_numbers = #tpu.dot_dimension_numbers<[1], [0], [0], [1], [0, 0, 1, 1], [], []>} : vector<8x128xf32>, vector<128x128xf32>, vector<8x128xf32> -> vector<8x128xf32>
    %c0_9 = arith.constant 0 : index
    %c0_10 = arith.constant 0 : index
    %10 = vector.load %arg5[%c0_9, %c0_10] : memref<1x128xf32, #tpu.memory_space<vmem>>, vector<1x128xf32>
    %11 = vector.broadcast %10 : vector<1x128xf32> to vector<8x128xf32>
    %12 = arith.addf %9, %11 : vector<8x128xf32>
    %cst_11 = arith.constant 0.000000e+00 : f32
    %13 = vector.broadcast %cst_11 : f32 to vector<8x128xf32>
    %14 = arith.maximumf %12, %13 : vector<8x128xf32>
    %c0_12 = arith.constant 0 : index
    %c0_13 = arith.constant 0 : index
    %15 = vector.load %arg6[%c0_12, %c0_13] : memref<128x128xf32, #tpu.memory_space<vmem>>, vector<128x128xf32>
    %cst_14 = arith.constant dense<0.000000e+00> : vector<8x128xf32>
    %16 = tpu.matmul %14, %15, %cst_14 {dimension_numbers = #tpu.dot_dimension_numbers<[1], [0], [0], [1], [0, 0, 1, 1], [], []>} : vector<8x128xf32>, vector<128x128xf32>, vector<8x128xf32> -> vector<8x128xf32>
    %c0_15 = arith.constant 0 : index
    %c0_16 = arith.constant 0 : index
    %17 = vector.load %arg7[%c0_15, %c0_16] : memref<1x128xf32, #tpu.memory_space<vmem>>, vector<1x128xf32>
    %18 = vector.broadcast %17 : vector<1x128xf32> to vector<8x128xf32>
    %19 = arith.addf %16, %18 : vector<8x128xf32>
    %20 = vector.extract_strided_slice %19 {offsets = [0, 0], sizes = [8, 1], strides = [1, 1]} : vector<8x128xf32> to vector<8x1xf32>
    %c0_17 = arith.constant 0 : index
    %c0_18 = arith.constant 0 : index
    %21 = vector.load %arg8[%c0_17, %c0_18] : memref<8x1xf32, #tpu.memory_space<vmem>>, vector<8x1xf32>
    tpu.vector_store %arg8[%c0_17, %c0_18], %20 {strides = array<i32>} : memref<8x1xf32, #tpu.memory_space<vmem>>, vector<8x1xf32>,
    return
  }
  func.func @transform_0(%arg0: i32) -> (i32, i32) {
    %c0_i32 = arith.constant 0 : i32
    %c0_i32_0 = arith.constant 0 : i32
    return %arg0, %c0_i32 : i32, i32
  }
  func.func @transform_1(%arg0: i32) -> (i32, i32) {
    %c0_i32 = arith.constant 0 : i32
    %c0_i32_0 = arith.constant 0 : i32
    %c0_i32_1 = arith.constant 0 : i32
    return %c0_i32, %c0_i32_0 : i32, i32
  }
  func.func @transform_2(%arg0: i32) -> (i32, i32) {
    %c0_i32 = arith.constant 0 : i32
    %c0_i32_0 = arith.constant 0 : i32
    %c0_i32_1 = arith.constant 0 : i32
    return %c0_i32, %c0_i32_0 : i32, i32
  }
  func.func @transform_3(%arg0: i32) -> (i32, i32) {
    %c0_i32 = arith.constant 0 : i32
    %c0_i32_0 = arith.constant 0 : i32
    %c0_i32_1 = arith.constant 0 : i32
    return %c0_i32, %c0_i32_0 : i32, i32
  }
  func.func @transform_4(%arg0: i32) -> (i32, i32) {
    %c0_i32 = arith.constant 0 : i32
    %c0_i32_0 = arith.constant 0 : i32
    %c0_i32_1 = arith.constant 0 : i32
    return %c0_i32, %c0_i32_0 : i32, i32
  }
  func.func @transform_5(%arg0: i32) -> (i32, i32) {
    %c0_i32 = arith.constant 0 : i32
    %c0_i32_0 = arith.constant 0 : i32
    %c0_i32_1 = arith.constant 0 : i32
    return %c0_i32, %c0_i32_0 : i32, i32
  }
  func.func @transform_6(%arg0: i32) -> (i32, i32) {
    %c0_i32 = arith.constant 0 : i32
    %c0_i32_0 = arith.constant 0 : i32
    %c0_i32_1 = arith.constant 0 : i32
    return %c0_i32, %c0_i32_0 : i32, i32
  }
  func.func @transform_7(%arg0: i32) -> (i32, i32) {
    %c0_i32 = arith.constant 0 : i32
    %c0_i32_0 = arith.constant 0 : i32
    return %arg0, %c0_i32 : i32, i32
  }
}

</mosaic_0001>

<llo_original>
// kernel: tpu_custom_call.1
$region0: #{tpu_custom_call.1}
  #allocation0 [shape = 'u32[]', space=smem, size = 0x4, offset = 0x4, fixed_abs, tag = 'smem constant byte address 0x4 - core index']
  #allocation1 [shape = 'u32[144,128]{1,0:T(1,128)}', space=vmem, size = 0x12000, scoped, tag = 'internal scratch']
  %s0 = inlined_call_operand.hbm [shape: f32[8,32], index: 0, kind: input, shape index: {}]
  %s1 = inlined_call_operand.hbm [shape: f32[32,128], index: 1, kind: input, shape index: {}]
  %s2 = inlined_call_operand.vmem [shape: f32[1,128], index: 2, kind: input, shape index: {}]
  %s3 = inlined_call_operand.hbm [shape: f32[128,128], index: 3, kind: input, shape index: {}]
  %s4 = inlined_call_operand.vmem [shape: f32[1,128], index: 4, kind: input, shape index: {}]
  %s5 = inlined_call_operand.hbm [shape: f32[128,128], index: 5, kind: input, shape index: {}]
  %s6 = inlined_call_operand.vmem [shape: f32[1,128], index: 6, kind: input, shape index: {}]
  %s7 = inlined_call_operand.vmem [shape: f32[8,1], index: 7, kind: output, shape index: {}]
  %s8 = sld [smem:[#allocation0]]
  $region54: #{tpu_custom_call.1} parent=0
    _
  %s10 = ssub.s32 1, %s8
  %s11 = scalar_select 0, %s10, %s8
  $region1: #{tpu_custom_call.1} parent=0
    #allocation2 [shape = 'u8[4096]{0}', space=vmem, size = 0x1000, scoped, tag = 'input window, operand 0, single buffered']
    #allocation3 [shape = 's32[1]{0}', space=sflag, size = 0x4, scoped, tag = 'scoped memory for tpu_custom_call.1']
    #allocation4 [shape = 'u8[16384]{0}', space=vmem, size = 0x4000, scoped, tag = 'input window, operand 1, single buffered']
    #allocation5 [shape = 's32[1]{0}', space=sflag, size = 0x4, scoped, tag = 'scoped memory for tpu_custom_call.1']
    #allocation6 [shape = 'u8[65536]{0}', space=vmem, size = 0x10000, scoped, tag = 'input window, operand 3, single buffered']
    #allocation7 [shape = 'u8[65536]{0}', space=vmem, size = 0x10000, scoped, tag = 'input window, operand 5, single buffered']
    #allocation8 [shape = 's32[1]{0}', space=sflag, size = 0x4, scoped, tag = 'scoped memory for tpu_custom_call.1']
    %12 = vsyncpa [#allocation3], 0
    %13 = vsyncpa [#allocation5], 0
    %14 = vsyncpa [#allocation8], 0
    // Predicated region
    $region2: #{tpu_custom_call.1} parent=1 // pred_check
      _
    $region3: #{tpu_custom_call.1} parent=1 // pred_check_branch
      %16 = sbr.rel (0) target = $region5
    $region4: #{tpu_custom_call.1} parent=1 // pred_region
      %s18 = ssub.s32 128, 128
      %19 = vsyncadd [#allocation3], %s18
      %s21 = sshll.u32 [#allocation2], 4
      %s22 = int_to_ptr.vmem [resolvable:$true] %s21
      %24 = dma.hbm_to_vmem [thread:$0]  %s0, 128, %s22, [#allocation3]
    $region5: #{tpu_custom_call.1} parent=1 // pred_fallthru
      _
    // Predicated region
    $region6: #{tpu_custom_call.1} parent=1 // pred_check
      _
    $region7: #{tpu_custom_call.1} parent=1 // pred_check_branch
      %26 = sbr.rel (0) target = $region9
    $region8: #{tpu_custom_call.1} parent=1 // pred_region
      %s28 = ssub.s32 512, 512
      %29 = vsyncadd [#allocation5], %s28
      %s30 = sshll.u32 [#allocation4], 4
      %s31 = int_to_ptr.vmem [resolvable:$true] %s30
      %36 = dma.hbm_to_vmem [thread:$0]  %s1, 512, %s31, [#allocation5], 128, 128, 8
    $region9: #{tpu_custom_call.1} parent=1 // pred_fallthru
      _
    // Predicated region
    $region10: #{tpu_custom_call.1} parent=1 // pred_check
      _
    $region11: #{tpu_custom_call.1} parent=1 // pred_check_branch
      %38 = sbr.rel (0) target = $region13
    $region12: #{tpu_custom_call.1} parent=1 // pred_region
      _
    $region13: #{tpu_custom_call.1} parent=1 // pred_fallthru
      _
    // Predicated region
    $region14: #{tpu_custom_call.1} parent=1 // pred_check
      _
    $region15: #{tpu_custom_call.1} parent=1 // pred_check_branch
      %40 = sbr.rel (0) target = $region17
    $region16: #{tpu_custom_call.1} parent=1 // pred_region
      %s42 = ssub.s32 2048, 2048
      %43 = vsyncadd [#allocation5], %s42
      %s44 = sshll.u32 [#allocation6], 4
      %s45 = int_to_ptr.vmem [resolvable:$true] %s44
      %50 = dma.hbm_to_vmem [thread:$0]  %s3, 2048, %s45, [#allocation5], 128, 128, 8
    $region17: #{tpu_custom_call.1} parent=1 // pred_fallthru
      _
    // Predicated region
    $region18: #{tpu_custom_call.1} parent=1 // pred_check
      _
    $region19: #{tpu_custom_call.1} parent=1 // pred_check_branch
      %52 = sbr.rel (0) target = $region21
    $region20: #{tpu_custom_call.1} parent=1 // pred_region
      _
    $region21: #{tpu_custom_call.1} parent=1 // pred_fallthru
      _
    // Predicated region
    $region22: #{tpu_custom_call.1} parent=1 // pred_check
      _
    $region23: #{tpu_custom_call.1} parent=1 // pred_check_branch
      %54 = sbr.rel (0) target = $region25
    $region24: #{tpu_custom_call.1} parent=1 // pred_region
      %s56 = ssub.s32 2048, 2048
      %57 = vsyncadd [#allocation8], %s56
      %s58 = sshll.u32 [#allocation7], 4
      %s59 = int_to_ptr.vmem [resolvable:$true] %s58
      %64 = dma.hbm_to_vmem [thread:$0]  %s5, 2048, %s59, [#allocation8], 128, 128, 8
    $region25: #{tpu_custom_call.1} parent=1 // pred_fallthru
      _
    // Predicated region
    $region26: #{tpu_custom_call.1} parent=1 // pred_check
      _
    $region27: #{tpu_custom_call.1} parent=1 // pred_check_branch
      %66 = sbr.rel (0) target = $region29
    $region28: #{tpu_custom_call.1} parent=1 // pred_region
      _
    $region29: #{tpu_custom_call.1} parent=1 // pred_fallthru
      _
    // Predicated region
    $region30: #{tpu_custom_call.1} parent=1 // pred_check
      _
    $region31: #{tpu_custom_call.1} parent=1 // pred_check_branch
      %68 = sbr.rel (0) target = $region33
    $region32: #{tpu_custom_call.1} parent=1 // pred_region
      %69 = dma.done [#allocation3], 128
    $region33: #{tpu_custom_call.1} parent=1 // pred_fallthru
      _
    // Predicated region
    $region34: #{tpu_custom_call.1} parent=1 // pred_check
      _
    $region35: #{tpu_custom_call.1} parent=1 // pred_check_branch
      %71 = sbr.rel (0) target = $region37
    $region36: #{tpu_custom_call.1} parent=1 // pred_region
      %72 = dma.done [#allocation5], 512
    $region37: #{tpu_custom_call.1} parent=1 // pred_fallthru
      _
    // Predicated region
    $region38: #{tpu_custom_call.1} parent=1 // pred_check
      _
    $region39: #{tpu_custom_call.1} parent=1 // pred_check_branch
      %74 = sbr.rel (0) target = $region41
    $region40: #{tpu_custom_call.1} parent=1 // pred_region
      %75 = dma.done [#allocation5], 2048
    $region41: #{tpu_custom_call.1} parent=1 // pred_fallthru
      _
    // Predicated region
    $region42: #{tpu_custom_call.1} parent=1 // pred_check
      _
    $region43: #{tpu_custom_call.1} parent=1 // pred_check_branch
      %77 = sbr.rel (0) target = $region45
    $region44: #{tpu_custom_call.1} parent=1 // pred_region
      %78 = dma.done [#allocation8], 2048
    $region45: #{tpu_custom_call.1} parent=1 // pred_fallthru
      _
    %v79 = vld [vmem:[#allocation2] sm:$0xff]
    %v80 = vld [vmem:[#allocation4] sm:$0xff]
    %v81 = vld [vmem:[#allocation4 + $0x8] sm:$0xff]
    %v82 = vld [vmem:[#allocation4 + $0x10] sm:$0xff]
    %v83 = vld [vmem:[#allocation4 + $0x18] sm:$0xff]
    %v84 = vld [vmem:[%s2] sm:$0x1]
    %v86 = vlaneseq
    %v87 = vshrl.u32 %v86, 7
    %v88 = vsub.s32 0, %v87
    %v89 = vrot.slane %v84, %v88
    %vm91 = vcmask 261120
    %v93 = vsel %vm91, %v79, 0
    %95 = vmatprep.subr.mxu0 0.0
    %96 = vmatpush1.msra.mxu0 0.0
    %97 = vmatprep.subr.mxu0 0.0
    %98 = vmatpush1.msra.mxu0 0.0
    %99 = vmatprep.subr.mxu0 0.0
    %100 = vmatpush1.msra.mxu0 0.0
    %101 = vmatprep.subr.mxu0 0.0
    %102 = vmatpush1.msra.mxu0 0.0
    %103 = vmatprep.subr.mxu0 0.0
    %104 = vmatpush1.msra.mxu0 0.0
    %105 = vmatprep.subr.mxu0 0.0
    %106 = vmatpush1.msra.mxu0 0.0
    %107 = vmatprep.subr.mxu0 0.0
    %108 = vmatpush1.msra.mxu0 0.0
    %109 = vmatprep.subr.mxu0 0.0
    %110 = vmatpush1.msra.mxu0 0.0
    %111 = vmatprep.subr.mxu0 0.0
    %112 = vmatpush1.msra.mxu0 0.0
    %113 = vmatprep.subr.mxu0 0.0
    %114 = vmatpush1.msra.mxu0 0.0
    %115 = vmatprep.subr.mxu0 0.0
    %116 = vmatpush1.msra.mxu0 0.0
    %117 = vmatprep.subr.mxu0 0.0
    %118 = vmatpush1.msra.mxu0 0.0
    %119 = vmatprep.subr.mxu0 0.0
    %120 = vmatpush1.msra.mxu0 %v83
    %121 = vmatprep.subr.mxu0 0.0
    %122 = vmatpush1.msra.mxu0 %v82
    %123 = vmatprep.subr.mxu0 0.0
    %124 = vmatpush1.msra.mxu0 %v81
    %125 = vmatprep.subr.mxu0 0.0
    %126 = vmatpush1.msra.mxu0 %v80
    %127 = vmatprep.subr.mxu0 0.0
    %128 = vmatpush2.msra.mxu0 0.0
    %129 = vmatprep.subr.mxu0 0.0
    %130 = vmatpush2.msra.mxu0 0.0
    %131 = vmatprep.subr.mxu0 0.0
    %132 = vmatpush2.msra.mxu0 0.0
    %133 = vmatprep.subr.mxu0 0.0
    %134 = vmatpush2.msra.mxu0 0.0
    %135 = vmatprep.subr.mxu0 0.0
    %136 = vmatpush2.msra.mxu0 0.0
    %137 = vmatprep.subr.mxu0 0.0
    %138 = vmatpush2.msra.mxu0 0.0
    %139 = vmatprep.subr.mxu0 0.0
    %140 = vmatpush2.msra.mxu0 0.0
    %141 = vmatprep.subr.mxu0 0.0
    %142 = vmatpush2.msra.mxu0 0.0
    %143 = vmatprep.subr.mxu0 0.0
    %144 = vmatpush2.msra.mxu0 0.0
    %145 = vmatprep.subr.mxu0 0.0
    %146 = vmatpush2.msra.mxu0 0.0
    %147 = vmatprep.subr.mxu0 0.0
    %148 = vmatpush2.msra.mxu0 0.0
    %149 = vmatprep.subr.mxu0 0.0
    %150 = vmatpush2.msra.mxu0 0.0
    %151 = vmatprep.subr.mxu0 0.0
    %152 = vmatpush2.msra.mxu0 0.0
    %153 = vmatprep.subr.mxu0 0.0
    %154 = vmatpush2.msra.mxu0 0.0
    %155 = vmatprep.subr.mxu0 0.0
    %156 = vmatpush2.msra.mxu0 0.0
    %157 = vmatprep.subr.mxu0 0.0
    %158 = vmatpush2.msra.mxu0 0.0
    %159 = vmatprep.mubr.f32.mxu0 0.0
    %160 = vmatmul.mubr.f32.gmra.mxu0 %v93
    %v161 = vpop.f32.mrf.mxu0
    %v162 = vadd.f32 %v89, %v161
    %v163 = vpop.f32.mrf.mxu0
    %164 = vdwg.mxu0
    %v165 = vmax.f32 %v162, 0.0
    %v166 = vld [vmem:[#allocation6] sm:$0xff]
    %v167 = vld [vmem:[#allocation6 + $0x8] sm:$0xff]
    %v168 = vld [vmem:[#allocation6 + $0x10] sm:$0xff]
    %v169 = vld [vmem:[#allocation6 + $0x18] sm:$0xff]
    %v170 = vld [vmem:[#allocation6 + $0x20] sm:$0xff]
    %v171 = vld [vmem:[#allocation6 + $0x28] sm:$0xff]
    %v172 = vld [vmem:[#allocation6 + $0x30] sm:$0xff]
    %v173 = vld [vmem:[#allocation6 + $0x38] sm:$0xff]
    %v174 = vld [vmem:[#allocation6 + $0x40] sm:$0xff]
    %v175 = vld [vmem:[#allocation6 + $0x48] sm:$0xff]
    %v176 = vld [vmem:[#allocation6 + $0x50] sm:$0xff]
    %v177 = vld [vmem:[#allocation6 + $0x58] sm:$0xff]
    %v178 = vld [vmem:[#allocation6 + $0x60] sm:$0xff]
    %v179 = vld [vmem:[#allocation6 + $0x68] sm:$0xff]
    %v180 = vld [vmem:[#allocation6 + $0x70] sm:$0xff]
    %v181 = vld [vmem:[#allocation6 + $0x78] sm:$0xff]
    %v182 = vld [vmem:[%s4] sm:$0x1]
    %v184 = vlaneseq
    %v185 = vshrl.u32 %v184, 7
    %v186 = vsub.s32 0, %v185
    %v187 = vrot.slane %v182, %v186
    %189 = vmatprep.subr.mxu0 0.0
    %190 = vmatpush1.msra.mxu0 %v181
    %191 = vmatprep.subr.mxu0 0.0
    %192 = vmatpush1.msra.mxu0 %v180
    %193 = vmatprep.subr.mxu0 0.0
    %194 = vmatpush1.msra.mxu0 %v179
    %195 = vmatprep.subr.mxu0 0.0
    %196 = vmatpush1.msra.mxu0 %v178
    %197 = vmatprep.subr.mxu0 0.0
    %198 = vmatpush1.msra.mxu0 %v177
    %199 = vmatprep.subr.mxu0 0.0
    %200 = vmatpush1.msra.mxu0 %v176
    %201 = vmatprep.subr.mxu0 0.0
    %202 = vmatpush1.msra.mxu0 %v175
    %203 = vmatprep.subr.mxu0 0.0
    %204 = vmatpush1.msra.mxu0 %v174
    %205 = vmatprep.subr.mxu0 0.0
    %206 = vmatpush1.msra.mxu0 %v173
    %207 = vmatprep.subr.mxu0 0.0
    %208 = vmatpush1.msra.mxu0 %v172
    %209 = vmatprep.subr.mxu0 0.0
    %210 = vmatpush1.msra.mxu0 %v171
    %211 = vmatprep.subr.mxu0 0.0
    %212 = vmatpush1.msra.mxu0 %v170
    %213 = vmatprep.subr.mxu0 0.0
    %214 = vmatpush1.msra.mxu0 %v169
    %215 = vmatprep.subr.mxu0 0.0
    %216 = vmatpush1.msra.mxu0 %v168
    %217 = vmatprep.subr.mxu0 0.0
    %218 = vmatpush1.msra.mxu0 %v167
    %219 = vmatprep.subr.mxu0 0.0
    %220 = vmatpush1.msra.mxu0 %v166
    %221 = vmatprep.subr.mxu0 0.0
    %222 = vmatpush2.msra.mxu0 0.0
    %223 = vmatprep.subr.mxu0 0.0
    %224 = vmatpush2.msra.mxu0 0.0
    %225 = vmatprep.subr.mxu0 0.0
    %226 = vmatpush2.msra.mxu0 0.0
    %227 = vmatprep.subr.mxu0 0.0
    %228 = vmatpush2.msra.mxu0 0.0
    %229 = vmatprep.subr.mxu0 0.0
    %230 = vmatpush2.msra.mxu0 0.0
    %231 = vmatprep.subr.mxu0 0.0
    %232 = vmatpush2.msra.mxu0 0.0
    %233 = vmatprep.subr.mxu0 0.0
    %234 = vmatpush2.msra.mxu0 0.0
    %235 = vmatprep.subr.mxu0 0.0
    %236 = vmatpush2.msra.mxu0 0.0
    %237 = vmatprep.subr.mxu0 0.0
    %238 = vmatpush2.msra.mxu0 0.0
    %239 = vmatprep.subr.mxu0 0.0
    %240 = vmatpush2.msra.mxu0 0.0
    %241 = vmatprep.subr.mxu0 0.0
    %242 = vmatpush2.msra.mxu0 0.0
    %243 = vmatprep.subr.mxu0 0.0
    %244 = vmatpush2.msra.mxu0 0.0
    %245 = vmatprep.subr.mxu0 0.0
    %246 = vmatpush2.msra.mxu0 0.0
    %247 = vmatprep.subr.mxu0 0.0
    %248 = vmatpush2.msra.mxu0 0.0
    %249 = vmatprep.subr.mxu0 0.0
    %250 = vmatpush2.msra.mxu0 0.0
    %251 = vmatprep.subr.mxu0 0.0
    %252 = vmatpush2.msra.mxu0 0.0
    %253 = vmatprep.mubr.f32.mxu0 0.0
    %254 = vmatmul.mubr.f32.gmra.mxu0 %v165
    %v255 = vpop.f32.mrf.mxu0
    %v256 = vadd.f32 %v187, %v255
    %v257 = vpop.f32.mrf.mxu0
    %258 = vdwg.mxu0
    %v259 = vmax.f32 %v256, 0.0
    %v260 = vld [vmem:[#allocation7] sm:$0xff]
    %v261 = vld [vmem:[#allocation7 + $0x8] sm:$0xff]
    %v262 = vld [vmem:[#allocation7 + $0x10] sm:$0xff]
    %v263 = vld [vmem:[#allocation7 + $0x18] sm:$0xff]
    %v264 = vld [vmem:[#allocation7 + $0x20] sm:$0xff]
    %v265 = vld [vmem:[#allocation7 + $0x28] sm:$0xff]
    %v266 = vld [vmem:[#allocation7 + $0x30] sm:$0xff]
    %v267 = vld [vmem:[#allocation7 + $0x38] sm:$0xff]
    %v268 = vld [vmem:[#allocation7 + $0x40] sm:$0xff]
    %v269 = vld [vmem:[#allocation7 + $0x48] sm:$0xff]
    %v270 = vld [vmem:[#allocation7 + $0x50] sm:$0xff]
    %v271 = vld [vmem:[#allocation7 + $0x58] sm:$0xff]
    %v272 = vld [vmem:[#allocation7 + $0x60] sm:$0xff]
    %v273 = vld [vmem:[#allocation7 + $0x68] sm:$0xff]
    %v274 = vld [vmem:[#allocation7 + $0x70] sm:$0xff]
    %v275 = vld [vmem:[#allocation7 + $0x78] sm:$0xff]
    %v276 = vld [vmem:[%s6] sm:$0x1]
    %v278 = vlaneseq
    %v279 = vshrl.u32 %v278, 7
    %v280 = vsub.s32 0, %v279
    %v281 = vrot.slane %v276, %v280
    %283 = vmatprep.subr.mxu0 0.0
    %284 = vmatpush1.msra.mxu0 %v275
    %285 = vmatprep.subr.mxu0 0.0
    %286 = vmatpush1.msra.mxu0 %v274
    %287 = vmatprep.subr.mxu0 0.0
    %288 = vmatpush1.msra.mxu0 %v273
    %289 = vmatprep.subr.mxu0 0.0
    %290 = vmatpush1.msra.mxu0 %v272
    %291 = vmatprep.subr.mxu0 0.0
    %292 = vmatpush1.msra.mxu0 %v271
    %293 = vmatprep.subr.mxu0 0.0
    %294 = vmatpush1.msra.mxu0 %v270
    %295 = vmatprep.subr.mxu0 0.0
    %296 = vmatpush1.msra.mxu0 %v269
    %297 = vmatprep.subr.mxu0 0.0
    %298 = vmatpush1.msra.mxu0 %v268
    %299 = vmatprep.subr.mxu0 0.0
    %300 = vmatpush1.msra.mxu0 %v267
    %301 = vmatprep.subr.mxu0 0.0
    %302 = vmatpush1.msra.mxu0 %v266
    %303 = vmatprep.subr.mxu0 0.0
    %304 = vmatpush1.msra.mxu0 %v265
    %305 = vmatprep.subr.mxu0 0.0
    %306 = vmatpush1.msra.mxu0 %v264
    %307 = vmatprep.subr.mxu0 0.0
    %308 = vmatpush1.msra.mxu0 %v263
    %309 = vmatprep.subr.mxu0 0.0
    %310 = vmatpush1.msra.mxu0 %v262
    %311 = vmatprep.subr.mxu0 0.0
    %312 = vmatpush1.msra.mxu0 %v261
    %313 = vmatprep.subr.mxu0 0.0
    %314 = vmatpush1.msra.mxu0 %v260
    %315 = vmatprep.subr.mxu0 0.0
    %316 = vmatpush2.msra.mxu0 0.0
    %317 = vmatprep.subr.mxu0 0.0
    %318 = vmatpush2.msra.mxu0 0.0
    %319 = vmatprep.subr.mxu0 0.0
    %320 = vmatpush2.msra.mxu0 0.0
    %321 = vmatprep.subr.mxu0 0.0
    %322 = vmatpush2.msra.mxu0 0.0
    %323 = vmatprep.subr.mxu0 0.0
    %324 = vmatpush2.msra.mxu0 0.0
    %325 = vmatprep.subr.mxu0 0.0
    %326 = vmatpush2.msra.mxu0 0.0
    %327 = vmatprep.subr.mxu0 0.0
    %328 = vmatpush2.msra.mxu0 0.0
    %329 = vmatprep.subr.mxu0 0.0
    %330 = vmatpush2.msra.mxu0 0.0
    %331 = vmatprep.subr.mxu0 0.0
    %332 = vmatpush2.msra.mxu0 0.0
    %333 = vmatprep.subr.mxu0 0.0
    %334 = vmatpush2.msra.mxu0 0.0
    %335 = vmatprep.subr.mxu0 0.0
    %336 = vmatpush2.msra.mxu0 0.0
    %337 = vmatprep.subr.mxu0 0.0
    %338 = vmatpush2.msra.mxu0 0.0
    %339 = vmatprep.subr.mxu0 0.0
    %340 = vmatpush2.msra.mxu0 0.0
    %341 = vmatprep.subr.mxu0 0.0
    %342 = vmatpush2.msra.mxu0 0.0
    %343 = vmatprep.subr.mxu0 0.0
    %344 = vmatpush2.msra.mxu0 0.0
    %345 = vmatprep.subr.mxu0 0.0
    %346 = vmatpush2.msra.mxu0 0.0
    %347 = vmatprep.mubr.f32.mxu0 0.0
    %348 = vmatmul.mubr.f32.gmra.mxu0 %v259
    %v349 = vpop.f32.mrf.mxu0
    %v350 = vadd.f32 %v281, %v349
    %v351 = vpop.f32.mrf.mxu0
    %352 = vdwg.mxu0
    %vm353 = vcmask 7168
    %354 = vst.msk [vmem:[%s7] sm:$0xff] %vm353, %v350
    // Predicated region
    $region46: #{tpu_custom_call.1} parent=1 // pred_check
      _
    $region47: #{tpu_custom_call.1} parent=1 // pred_check_branch
      %356 = sbr.rel (0) target = $region49
    $region48: #{tpu_custom_call.1} parent=1 // pred_region
      _
    $region49: #{tpu_custom_call.1} parent=1 // pred_fallthru
      _
    // Predicated region
    $region50: #{tpu_custom_call.1} parent=1 // pred_check
      _
    $region51: #{tpu_custom_call.1} parent=1 // pred_check_branch
      %358 = sbr.rel (0) target = $region53
    $region52: #{tpu_custom_call.1} parent=1 // pred_region
      _
    $region53: #{tpu_custom_call.1} parent=1 // pred_fallthru
      _
    %359 = vsyncpa [#allocation3], 1
    %360 = vsyncpa [#allocation5], 1
    %361 = vsyncpa [#allocation8], 1

// kernel: tpu_custom_call.1
$region0: #{tpu_custom_call.1}
  #allocation0 [shape = 'u32[]', space=smem, size = 0x4, offset = 0x4, fixed_abs, tag = 'smem constant byte address 0x4 - core index']
  #allocation1 [shape = 'u32[144,128]{1,0:T(1,128)}', space=vmem, size = 0x12000, scoped, tag = 'internal scratch']
  %s0 = inlined_call_operand.hbm [shape: f32[8,32], index: 0, kind: input, shape index: {}]
  %s1 = inlined_call_operand.hbm [shape: f32[32,128], index: 1, kind: input, shape index: {}]
  %s2 = inlined_call_operand.vmem [shape: f32[1,128], index: 2, kind: input, shape index: {}]
  %s3 = inlined_call_operand.hbm [shape: f32[128,128], index: 3, kind: input, shape index: {}]
  %s4 = inlined_call_operand.vmem [shape: f32[1,128], index: 4, kind: input, shape index: {}]
  %s5 = inlined_call_operand.hbm [shape: f32[128,128], index: 5, kind: input, shape index: {}]
  %s6 = inlined_call_operand.vmem [shape: f32[1,128], index: 6, kind: input, shape index: {}]
  %s7 = inlined_call_operand.vmem [shape: f32[8,1], index: 7, kind: output, shape index: {}]
  %s8 = sld [smem:[#allocation0]]
  $region54: #{tpu_custom_call.1} parent=0
    _
  %s10 = ssub.s32 1, %s8
  %s11 = scalar_select 0, %s10, %s8
  $region1: #{tpu_custom_call.1} parent=0
    #allocation2 [shape = 'u8[4096]{0}', space=vmem, size = 0x1000, scoped, tag = 'input window, operand 0, single buffered']
    #allocation3 [shape = 's32[1]{0}', space=sflag, size = 0x4, scoped, tag = 'scoped memory for tpu_custom_call.1']
    #allocation4 [shape = 'u8[16384]{0}', space=vmem, size = 0x4000, scoped, tag = 'input window, operand 1, single buffered']
    #allocation5 [shape = 's32[1]{0}', space=sflag, size = 0x4, scoped, tag = 'scoped memory for tpu_custom_call.1']
    #allocation6 [shape = 'u8[65536]{0}', space=vmem, size = 0x10000, scoped, tag = 'input window, operand 3, single buffered']
    #allocation7 [shape = 'u8[65536]{0}', space=vmem, size = 0x10000, scoped, tag = 'input window, operand 5, single buffered']
    #allocation8 [shape = 's32[1]{0}', space=sflag, size = 0x4, scoped, tag = 'scoped memory for tpu_custom_call.1']
    %12 = vsyncpa [#allocation3], 0
    %13 = vsyncpa [#allocation5], 0
    %14 = vsyncpa [#allocation8], 0
    // Predicated region
    $region2: #{tpu_custom_call.1} parent=1 // pred_check
      _
    $region3: #{tpu_custom_call.1} parent=1 // pred_check_branch
      %16 = sbr.rel (0) target = $region5
    $region4: #{tpu_custom_call.1} parent=1 // pred_region
      %s18 = ssub.s32 128, 128
      %19 = vsyncadd [#allocation3], %s18
      %s21 = sshll.u32 [#allocation2], 4
      %s22 = int_to_ptr.vmem [resolvable:$true] %s21
      %24 = dma.hbm_to_vmem [thread:$0]  %s0, 128, %s22, [#allocation3]
    $region5: #{tpu_custom_call.1} parent=1 // pred_fallthru
      _
    // Predicated region
    $region6: #{tpu_custom_call.1} parent=1 // pred_check
      _
    $region7: #{tpu_custom_call.1} parent=1 // pred_check_branch
      %26 = sbr.rel (0) target = $region9
    $region8: #{tpu_custom_call.1} parent=1 // pred_region
      %s28 = ssub.s32 512, 512
      %29 = vsyncadd [#allocation5], %s28
      %s30 = sshll.u32 [#allocation4], 4
      %s31 = int_to_ptr.vmem [resolvable:$true] %s30
      %36 = dma.hbm_to_vmem [thread:$0]  %s1, 512, %s31, [#allocation5], 128, 128, 8
    $region9: #{tpu_custom_call.1} parent=1 // pred_fallthru
      _
    // Predicated region
    $region10: #{tpu_custom_call.1} parent=1 // pred_check
      _
    $region11: #{tpu_custom_call.1} parent=1 // pred_check_branch
      %38 = sbr.rel (0) target = $region13
    $region12: #{tpu_custom_call.1} parent=1 // pred_region
      _
    $region13: #{tpu_custom_call.1} parent=1 // pred_fallthru
      _
    // Predicated region
    $region14: #{tpu_custom_call.1} parent=1 // pred_check
      _
    $region15: #{tpu_custom_call.1} parent=1 // pred_check_branch
      %40 = sbr.rel (0) target = $region17
    $region16: #{tpu_custom_call.1} parent=1 // pred_region
      %s42 = ssub.s32 2048, 2048
      %43 = vsyncadd [#allocation5], %s42
      %s44 = sshll.u32 [#allocation6], 4
      %s45 = int_to_ptr.vmem [resolvable:$true] %s44
      %50 = dma.hbm_to_vmem [thread:$0]  %s3, 2048, %s45, [#allocation5], 128, 128, 8
    $region17: #{tpu_custom_call.1} parent=1 // pred_fallthru
      _
    // Predicated region
    $region18: #{tpu_custom_call.1} parent=1 // pred_check
      _
    $region19: #{tpu_custom_call.1} parent=1 // pred_check_branch
      %52 = sbr.rel (0) target = $region21
    $region20: #{tpu_custom_call.1} parent=1 // pred_region
      _
    $region21: #{tpu_custom_call.1} parent=1 // pred_fallthru
      _
    // Predicated region
    $region22: #{tpu_custom_call.1} parent=1 // pred_check
      _
    $region23: #{tpu_custom_call.1} parent=1 // pred_check_branch
      %54 = sbr.rel (0) target = $region25
    $region24: #{tpu_custom_call.1} parent=1 // pred_region
      %s56 = ssub.s32 2048, 2048
      %57 = vsyncadd [#allocation8], %s56
      %s58 = sshll.u32 [#allocation7], 4
      %s59 = int_to_ptr.vmem [resolvable:$true] %s58
      %64 = dma.hbm_to_vmem [thread:$0]  %s5, 2048, %s59, [#allocation8], 128, 128, 8
    $region25: #{tpu_custom_call.1} parent=1 // pred_fallthru
      _
    // Predicated region
    $region26: #{tpu_custom_call.1} parent=1 // pred_check
      _
    $region27: #{tpu_custom_call.1} parent=1 // pred_check_branch
      %66 = sbr.rel (0) target = $region29
    $region28: #{tpu_custom_call.1} parent=1 // pred_region
      _
    $region29: #{tpu_custom_call.1} parent=1 // pred_fallthru
      _
    // Predicated region
    $region30: #{tpu_custom_call.1} parent=1 // pred_check
      _
    $region31: #{tpu_custom_call.1} parent=1 // pred_check_branch
      %68 = sbr.rel (0) target = $region33
    $region32: #{tpu_custom_call.1} parent=1 // pred_region
      %69 = dma.done [#allocation3], 128
    $region33: #{tpu_custom_call.1} parent=1 // pred_fallthru
      _
    // Predicated region
    $region34: #{tpu_custom_call.1} parent=1 // pred_check
      _
    $region35: #{tpu_custom_call.1} parent=1 // pred_check_branch
      %71 = sbr.rel (0) target = $region37
    $region36: #{tpu_custom_call.1} parent=1 // pred_region
      %72 = dma.done [#allocation5], 512
    $region37: #{tpu_custom_call.1} parent=1 // pred_fallthru
      _
    // Predicated region
    $region38: #{tpu_custom_call.1} parent=1 // pred_check
      _
    $region39: #{tpu_custom_call.1} parent=1 // pred_check_branch
      %74 = sbr.rel (0) target = $region41
    $region40: #{tpu_custom_call.1} parent=1 // pred_region
      %75 = dma.done [#allocation5], 2048
    $region41: #{tpu_custom_call.1} parent=1 // pred_fallthru
      _
    // Predicated region
    $region42: #{tpu_custom_call.1} parent=1 // pred_check
      _
    $region43: #{tpu_custom_call.1} parent=1 // pred_check_branch
      %77 = sbr.rel (0) target = $region45
    $region44: #{tpu_custom_call.1} parent=1 // pred_region
      %78 = dma.done [#allocation8], 2048
    $region45: #{tpu_custom_call.1} parent=1 // pred_fallthru
      _
    %v79 = vld [vmem:[#allocation2] sm:$0xff]
    %v80 = vld [vmem:[#allocation4] sm:$0xff]
    %v81 = vld [vmem:[#allocation4 + $0x8] sm:$0xff]
    %v82 = vld [vmem:[#allocation4 + $0x10] sm:$0xff]
    %v83 = vld [vmem:[#allocation4 + $0x18] sm:$0xff]
    %v84 = vld [vmem:[%s2] sm:$0x1]
    %v86 = vlaneseq
    %v87 = vshrl.u32 %v86, 7
    %v88 = vsub.s32 0, %v87
    %v89 = vrot.slane %v84, %v88
    %vm91 = vcmask 261120
    %v93 = vsel %vm91, %v79, 0
    %95 = vmatprep.subr.mxu0 0.0
    %96 = vmatpush1.msra.mxu0 0.0
    %97 = vmatprep.subr.mxu0 0.0
    %98 = vmatpush1.msra.mxu0 0.0
    %99 = vmatprep.subr.mxu0 0.0
    %100 = vmatpush1.msra.mxu0 0.0
    %101 = vmatprep.subr.mxu0 0.0
    %102 = vmatpush1.msra.mxu0 0.0
    %103 = vmatprep.subr.mxu0 0.0
    %104 = vmatpush1.msra.mxu0 0.0
    %105 = vmatprep.subr.mxu0 0.0
    %106 = vmatpush1.msra.mxu0 0.0
    %107 = vmatprep.subr.mxu0 0.0
    %108 = vmatpush1.msra.mxu0 0.0
    %109 = vmatprep.subr.mxu0 0.0
    %110 = vmatpush1.msra.mxu0 0.0
    %111 = vmatprep.subr.mxu0 0.0
    %112 = vmatpush1.msra.mxu0 0.0
    %113 = vmatprep.subr.mxu0 0.0
    %114 = vmatpush1.msra.mxu0 0.0
    %115 = vmatprep.subr.mxu0 0.0
    %116 = vmatpush1.msra.mxu0 0.0
    %117 = vmatprep.subr.mxu0 0.0
    %118 = vmatpush1.msra.mxu0 0.0
    %119 = vmatprep.subr.mxu0 0.0
    %120 = vmatpush1.msra.mxu0 %v83
    %121 = vmatprep.subr.mxu0 0.0
    %122 = vmatpush1.msra.mxu0 %v82
    %123 = vmatprep.subr.mxu0 0.0
    %124 = vmatpush1.msra.mxu0 %v81
    %125 = vmatprep.subr.mxu0 0.0
    %126 = vmatpush1.msra.mxu0 %v80
    %127 = vmatprep.subr.mxu0 0.0
    %128 = vmatpush2.msra.mxu0 0.0
    %129 = vmatprep.subr.mxu0 0.0
    %130 = vmatpush2.msra.mxu0 0.0
    %131 = vmatprep.subr.mxu0 0.0
    %132 = vmatpush2.msra.mxu0 0.0
    %133 = vmatprep.subr.mxu0 0.0
    %134 = vmatpush2.msra.mxu0 0.0
    %135 = vmatprep.subr.mxu0 0.0
    %136 = vmatpush2.msra.mxu0 0.0
    %137 = vmatprep.subr.mxu0 0.0
    %138 = vmatpush2.msra.mxu0 0.0
    %139 = vmatprep.subr.mxu0 0.0
    %140 = vmatpush2.msra.mxu0 0.0
    %141 = vmatprep.subr.mxu0 0.0
    %142 = vmatpush2.msra.mxu0 0.0
    %143 = vmatprep.subr.mxu0 0.0
    %144 = vmatpush2.msra.mxu0 0.0
    %145 = vmatprep.subr.mxu0 0.0
    %146 = vmatpush2.msra.mxu0 0.0
    %147 = vmatprep.subr.mxu0 0.0
    %148 = vmatpush2.msra.mxu0 0.0
    %149 = vmatprep.subr.mxu0 0.0
    %150 = vmatpush2.msra.mxu0 0.0
    %151 = vmatprep.subr.mxu0 0.0
    %152 = vmatpush2.msra.mxu0 0.0
    %153 = vmatprep.subr.mxu0 0.0
    %154 = vmatpush2.msra.mxu0 0.0
    %155 = vmatprep.subr.mxu0 0.0
    %156 = vmatpush2.msra.mxu0 0.0
    %157 = vmatprep.subr.mxu0 0.0
    %158 = vmatpush2.msra.mxu0 0.0
    %159 = vmatprep.mubr.f32.mxu0 0.0
    %160 = vmatmul.mubr.f32.gmra.mxu0 %v93
    %v161 = vpop.f32.mrf.mxu0
    %v162 = vadd.f32 %v89, %v161
    %v163 = vpop.f32.mrf.mxu0
    %164 = vdwg.mxu0
    %v165 = vmax.f32 %v162, 0.0
    %v166 = vld [vmem:[#allocation6] sm:$0xff]
    %v167 = vld [vmem:[#allocation6 + $0x8] sm:$0xff]
    %v168 = vld [vmem:[#allocation6 + $0x10] sm:$0xff]
    %v169 = vld [vmem:[#allocation6 + $0x18] sm:$0xff]
    %v170 = vld [vmem:[#allocation6 + $0x20] sm:$0xff]
    %v171 = vld [vmem:[#allocation6 + $0x28] sm:$0xff]
    %v172 = vld [vmem:[#allocation6 + $0x30] sm:$0xff]
    %v173 = vld [vmem:[#allocation6 + $0x38] sm:$0xff]
    %v174 = vld [vmem:[#allocation6 + $0x40] sm:$0xff]
    %v175 = vld [vmem:[#allocation6 + $0x48] sm:$0xff]
    %v176 = vld [vmem:[#allocation6 + $0x50] sm:$0xff]
    %v177 = vld [vmem:[#allocation6 + $0x58] sm:$0xff]
    %v178 = vld [vmem:[#allocation6 + $0x60] sm:$0xff]
    %v179 = vld [vmem:[#allocation6 + $0x68] sm:$0xff]
    %v180 = vld [vmem:[#allocation6 + $0x70] sm:$0xff]
    %v181 = vld [vmem:[#allocation6 + $0x78] sm:$0xff]
    %v182 = vld [vmem:[%s4] sm:$0x1]
    %v184 = vlaneseq
    %v185 = vshrl.u32 %v184, 7
    %v186 = vsub.s32 0, %v185
    %v187 = vrot.slane %v182, %v186
    %189 = vmatprep.subr.mxu0 0.0
    %190 = vmatpush1.msra.mxu0 %v181
    %191 = vmatprep.subr.mxu0 0.0
    %192 = vmatpush1.msra.mxu0 %v180
    %193 = vmatprep.subr.mxu0 0.0
    %194 = vmatpush1.msra.mxu0 %v179
    %195 = vmatprep.subr.mxu0 0.0
    %196 = vmatpush1.msra.mxu0 %v178
    %197 = vmatprep.subr.mxu0 0.0
    %198 = vmatpush1.msra.mxu0 %v177
    %199 = vmatprep.subr.mxu0 0.0
    %200 = vmatpush1.msra.mxu0 %v176
    %201 = vmatprep.subr.mxu0 0.0
    %202 = vmatpush1.msra.mxu0 %v175
    %203 = vmatprep.subr.mxu0 0.0
    %204 = vmatpush1.msra.mxu0 %v174
    %205 = vmatprep.subr.mxu0 0.0
    %206 = vmatpush1.msra.mxu0 %v173
    %207 = vmatprep.subr.mxu0 0.0
    %208 = vmatpush1.msra.mxu0 %v172
    %209 = vmatprep.subr.mxu0 0.0
    %210 = vmatpush1.msra.mxu0 %v171
    %211 = vmatprep.subr.mxu0 0.0
    %212 = vmatpush1.msra.mxu0 %v170
    %213 = vmatprep.subr.mxu0 0.0
    %214 = vmatpush1.msra.mxu0 %v169
    %215 = vmatprep.subr.mxu0 0.0
    %216 = vmatpush1.msra.mxu0 %v168
    %217 = vmatprep.subr.mxu0 0.0
    %218 = vmatpush1.msra.mxu0 %v167
    %219 = vmatprep.subr.mxu0 0.0
    %220 = vmatpush1.msra.mxu0 %v166
    %221 = vmatprep.subr.mxu0 0.0
    %222 = vmatpush2.msra.mxu0 0.0
    %223 = vmatprep.subr.mxu0 0.0
    %224 = vmatpush2.msra.mxu0 0.0
    %225 = vmatprep.subr.mxu0 0.0
    %226 = vmatpush2.msra.mxu0 0.0
    %227 = vmatprep.subr.mxu0 0.0
    %228 = vmatpush2.msra.mxu0 0.0
    %229 = vmatprep.subr.mxu0 0.0
    %230 = vmatpush2.msra.mxu0 0.0
    %231 = vmatprep.subr.mxu0 0.0
    %232 = vmatpush2.msra.mxu0 0.0
    %233 = vmatprep.subr.mxu0 0.0
    %234 = vmatpush2.msra.mxu0 0.0
    %235 = vmatprep.subr.mxu0 0.0
    %236 = vmatpush2.msra.mxu0 0.0
    %237 = vmatprep.subr.mxu0 0.0
    %238 = vmatpush2.msra.mxu0 0.0
    %239 = vmatprep.subr.mxu0 0.0
    %240 = vmatpush2.msra.mxu0 0.0
    %241 = vmatprep.subr.mxu0 0.0
    %242 = vmatpush2.msra.mxu0 0.0
    %243 = vmatprep.subr.mxu0 0.0
    %244 = vmatpush2.msra.mxu0 0.0
    %245 = vmatprep.subr.mxu0 0.0
    %246 = vmatpush2.msra.mxu0 0.0
    %247 = vmatprep.subr.mxu0 0.0
    %248 = vmatpush2.msra.mxu0 0.0
    %249 = vmatprep.subr.mxu0 0.0
    %250 = vmatpush2.msra.mxu0 0.0
    %251 = vmatprep.subr.mxu0 0.0
    %252 = vmatpush2.msra.mxu0 0.0
    %253 = vmatprep.mubr.f32.mxu0 0.0
    %254 = vmatmul.mubr.f32.gmra.mxu0 %v165
    %v255 = vpop.f32.mrf.mxu0
    %v256 = vadd.f32 %v187, %v255
    %v257 = vpop.f32.mrf.mxu0
    %258 = vdwg.mxu0
    %v259 = vmax.f32 %v256, 0.0
    %v260 = vld [vmem:[#allocation7] sm:$0xff]
    %v261 = vld [vmem:[#allocation7 + $0x8] sm:$0xff]
    %v262 = vld [vmem:[#allocation7 + $0x10] sm:$0xff]
    %v263 = vld [vmem:[#allocation7 + $0x18] sm:$0xff]
    %v264 = vld [vmem:[#allocation7 + $0x20] sm:$0xff]
    %v265 = vld [vmem:[#allocation7 + $0x28] sm:$0xff]
    %v266 = vld [vmem:[#allocation7 + $0x30] sm:$0xff]
    %v267 = vld [vmem:[#allocation7 + $0x38] sm:$0xff]
    %v268 = vld [vmem:[#allocation7 + $0x40] sm:$0xff]
    %v269 = vld [vmem:[#allocation7 + $0x48] sm:$0xff]
    %v270 = vld [vmem:[#allocation7 + $0x50] sm:$0xff]
    %v271 = vld [vmem:[#allocation7 + $0x58] sm:$0xff]
    %v272 = vld [vmem:[#allocation7 + $0x60] sm:$0xff]
    %v273 = vld [vmem:[#allocation7 + $0x68] sm:$0xff]
    %v274 = vld [vmem:[#allocation7 + $0x70] sm:$0xff]
    %v275 = vld [vmem:[#allocation7 + $0x78] sm:$0xff]
    %v276 = vld [vmem:[%s6] sm:$0x1]
    %v278 = vlaneseq
    %v279 = vshrl.u32 %v278, 7
    %v280 = vsub.s32 0, %v279
    %v281 = vrot.slane %v276, %v280
    %283 = vmatprep.subr.mxu0 0.0
    %284 = vmatpush1.msra.mxu0 %v275
    %285 = vmatprep.subr.mxu0 0.0
    %286 = vmatpush1.msra.mxu0 %v274
    %287 = vmatprep.subr.mxu0 0.0
    %288 = vmatpush1.msra.mxu0 %v273
    %289 = vmatprep.subr.mxu0 0.0
    %290 = vmatpush1.msra.mxu0 %v272
    %291 = vmatprep.subr.mxu0 0.0
    %292 = vmatpush1.msra.mxu0 %v271
    %293 = vmatprep.subr.mxu0 0.0
    %294 = vmatpush1.msra.mxu0 %v270
    %295 = vmatprep.subr.mxu0 0.0
    %296 = vmatpush1.msra.mxu0 %v269
    %297 = vmatprep.subr.mxu0 0.0
    %298 = vmatpush1.msra.mxu0 %v268
    %299 = vmatprep.subr.mxu0 0.0
    %300 = vmatpush1.msra.mxu0 %v267
    %301 = vmatprep.subr.mxu0 0.0
    %302 = vmatpush1.msra.mxu0 %v266
    %303 = vmatprep.subr.mxu0 0.0
    %304 = vmatpush1.msra.mxu0 %v265
    %305 = vmatprep.subr.mxu0 0.0
    %306 = vmatpush1.msra.mxu0 %v264
    %307 = vmatprep.subr.mxu0 0.0
    %308 = vmatpush1.msra.mxu0 %v263
    %309 = vmatprep.subr.mxu0 0.0
    %310 = vmatpush1.msra.mxu0 %v262
    %311 = vmatprep.subr.mxu0 0.0
    %312 = vmatpush1.msra.mxu0 %v261
    %313 = vmatprep.subr.mxu0 0.0
    %314 = vmatpush1.msra.mxu0 %v260
    %315 = vmatprep.subr.mxu0 0.0
    %316 = vmatpush2.msra.mxu0 0.0
    %317 = vmatprep.subr.mxu0 0.0
    %318 = vmatpush2.msra.mxu0 0.0
    %319 = vmatprep.subr.mxu0 0.0
    %320 = vmatpush2.msra.mxu0 0.0
    %321 = vmatprep.subr.mxu0 0.0
    %322 = vmatpush2.msra.mxu0 0.0
    %323 = vmatprep.subr.mxu0 0.0
    %324 = vmatpush2.msra.mxu0 0.0
    %325 = vmatprep.subr.mxu0 0.0
    %326 = vmatpush2.msra.mxu0 0.0
    %327 = vmatprep.subr.mxu0 0.0
    %328 = vmatpush2.msra.mxu0 0.0
    %329 = vmatprep.subr.mxu0 0.0
    %330 = vmatpush2.msra.mxu0 0.0
    %331 = vmatprep.subr.mxu0 0.0
    %332 = vmatpush2.msra.mxu0 0.0
    %333 = vmatprep.subr.mxu0 0.0
    %334 = vmatpush2.msra.mxu0 0.0
    %335 = vmatprep.subr.mxu0 0.0
    %336 = vmatpush2.msra.mxu0 0.0
    %337 = vmatprep.subr.mxu0 0.0
    %338 = vmatpush2.msra.mxu0 0.0
    %339 = vmatprep.subr.mxu0 0.0
    %340 = vmatpush2.msra.mxu0 0.0
    %341 = vmatprep.subr.mxu0 0.0
    %342 = vmatpush2.msra.mxu0 0.0
    %343 = vmatprep.subr.mxu0 0.0
    %344 = vmatpush2.msra.mxu0 0.0
    %345 = vmatprep.subr.mxu0 0.0
    %346 = vmatpush2.msra.mxu0 0.0
    %347 = vmatprep.mubr.f32.mxu0 0.0
    %348 = vmatmul.mubr.f32.gmra.mxu0 %v259
    %v349 = vpop.f32.mrf.mxu0
    %v350 = vadd.f32 %v281, %v349
    %v351 = vpop.f32.mrf.mxu0
    %352 = vdwg.mxu0
    %vm353 = vcmask 7168
    %354 = vst.msk [vmem:[%s7] sm:$0xff] %vm353, %v350
    // Predicated region
    $region46: #{tpu_custom_call.1} parent=1 // pred_check
      _
    $region47: #{tpu_custom_call.1} parent=1 // pred_check_branch
      %356 = sbr.rel (0) target = $region49
    $region48: #{tpu_custom_call.1} parent=1 // pred_region
      _
    $region49: #{tpu_custom_call.1} parent=1 // pred_fallthru
      _
    // Predicated region
    $region50: #{tpu_custom_call.1} parent=1 // pred_check
      _
    $region51: #{tpu_custom_call.1} parent=1 // pred_check_branch
      %358 = sbr.rel (0) target = $region53
    $region52: #{tpu_custom_call.1} parent=1 // pred_region
      _
    $region53: #{tpu_custom_call.1} parent=1 // pred_fallthru
      _
    %359 = vsyncpa [#allocation3], 1
    %360 = vsyncpa [#allocation5], 1
    %361 = vsyncpa [#allocation8], 1

</llo_original>
